<compile_context>
chip_gen: v5e
topology: v5e:2x2
jax: 0.10.0
libtpu: 0.0.40
codegen_flags: <defaults>
</compile_context>

<pallas_src>
import jax
import jax.numpy as jnp
from jax.experimental import pallas as pl
from jax.experimental.pallas import tpu as pltpu

LANE = 128        # TPU vreg lane width
MAX_LANE = 1024   # widest last dim we reshape to (lane-dense slabs)
_SUBLANE = 8


def _hinge_kernel(o_ref, t_ref, out_ref):
    # Elementwise hinge: relu(1 - o*t). Compute in f32 (free on the VPU for a
    # mem-bound kernel; matches torch's f32 arithmetic for low-precision inputs).
    o = o_ref[...].astype(jnp.float32)
    t = t_ref[...].astype(jnp.float32)
    out_ref[...] = jnp.maximum(1.0 - o * t, 0.0).astype(out_ref.dtype)


def _block_elems_cap():
    """Per-block element budget so 3 operands x 2 pipeline buffers comfortably
    fit the scoped-VMEM budget on every TPU generation."""
    try:
        kind = jax.devices()[0].device_kind.lower()
    except Exception:  # pragma: no cover - best effort detection
        kind = ""
    if "v5 lite" in kind or "v5lite" in kind or "v5e" in kind:
        return 4096 * LANE    # 12 MiB double-buffered (f32) on v5e
    return 8192 * LANE        # 24 MiB double-buffered (f32) on v6e / v7x


def _round_up(x, m):
    return -(-x // m) * m


def _pick_block_rows(rows, lane, itemsize, cap_elems):
    """Rows per block: as large as the VMEM budget allows, but prefer ~8 grid
    steps (v7x megacore + pipelining) as long as every step still moves at
    least ~256 KiB per operand."""
    cap_rows = max(_SUBLANE, (cap_elems // lane) // _SUBLANE * _SUBLANE)
    min_rows = max(
        _SUBLANE,
        _round_up(max(1, (256 << 10) // (lane * itemsize)), _SUBLANE),
    )
    target = _round_up(-(-rows // 8), _SUBLANE)   # ceil(rows/8) -> ~8 steps
    blk = max(min(cap_rows, target), min_rows)
    return min(blk, rows)  # full-extent block (always legal) if array is small


def _hinge_pallas_2d(o2, t2, out_dtype):
    rows, lane = o2.shape
    itemsize = max(o2.dtype.itemsize, t2.dtype.itemsize,
                   jnp.dtype(out_dtype).itemsize)
    blk = _pick_block_rows(rows, lane, itemsize, _block_elems_cap())
    grid = (pl.cdiv(rows, blk),)

    # Raise the scoped-VMEM limit so double-buffering is never shrunk; stays
    # <= ~32 MiB, safe against v7x's 64 MiB physical VMEM per TensorCore.
    block_bytes = blk * lane * (o2.dtype.itemsize + t2.dtype.itemsize
                                + jnp.dtype(out_dtype).itemsize)
    vmem_limit = max(2 * block_bytes + (4 << 20), 32 << 20)

    return pl.pallas_call(
        _hinge_kernel,
        out_shape=jax.ShapeDtypeStruct((rows, lane), out_dtype),
        grid=grid,
        in_specs=[
            pl.BlockSpec((blk, lane), lambda i: (i, 0)),
            pl.BlockSpec((blk, lane), lambda i: (i, 0)),
        ],
        out_specs=pl.BlockSpec((blk, lane), lambda i: (i, 0)),
        compiler_params=pltpu.CompilerParams(
            dimension_semantics=("parallel",),
            vmem_limit_bytes=vmem_limit,
        ),
    )(o2, t2)


def hinge_loss(output, target, *, min_pallas_elems=1 << 20):
    """Pallas implementation of HingeLoss.forward(output, target)."""
    o = jnp.squeeze(output)
    t = jnp.squeeze(target)
    # Match torch's broadcasting of squeeze(output) * squeeze(target).
    o, t = jnp.broadcast_arrays(o, t)
    out_dtype = jnp.result_type(o.dtype, t.dtype)
    orig_shape = o.shape
    n = int(o.size)

    # Small or ragged (n % 128 != 0) workloads: fused XLA elementwise is at
    # roofline already; pallas_call launch overhead / pad+slice copies only
    # make it slower.
    if n < min_pallas_elems or n % LANE != 0:
        return jnp.maximum(
            1.0 - o.astype(jnp.float32) * t.astype(jnp.float32), 0.0
        ).astype(out_dtype)

    # Lane-dense reshape: widest power-of-two multiple of 128 dividing n.
    w = LANE
    while w * 2 <= MAX_LANE and n % (w * 2) == 0:
        w *= 2
    rows = n // w
    out2 = _hinge_pallas_2d(o.reshape(rows, w), t.reshape(rows, w), out_dtype)
    return out2.reshape(orig_shape)


def _reference(output, target):
    o = jnp.squeeze(output).astype(jnp.float32)
    t = jnp.squeeze(target).astype(jnp.float32)
    return jnp.maximum(1.0 - o * t, 0.0)


if __name__ == "__main__":
    key = jax.random.PRNGKey(0)
    k1, k2, k3, k4, k5, k6 = jax.random.split(key, 6)

    # Typical use in sparse_parities.py: model output (B, 1), +/-1 targets (B,).
    B = 256
    output = jax.random.normal(k1, (B, 1), dtype=jnp.float32)
    target = jnp.sign(jax.random.normal(k2, (B,), dtype=jnp.float32))
    # min_pallas_elems=0 forces the Pallas path at this small demo size
    # (the production default routes <1M-element batches to XLA fusion).
    loss = hinge_loss(output, target, min_pallas_elems=0)
    jax.block_until_ready(loss)
    ref = _reference(output, target)
    assert loss.shape == ref.shape
    assert jnp.allclose(loss, ref, atol=1e-6), "mismatch (small aligned case)"

    # Multi-block grid with a partial last block (rows % blk != 0).
    B2 = 131200  # multiple of 128 but not 256 -> W=128, 1025 rows, 3 grid steps
    output2 = jax.random.normal(k3, (B2, 1), dtype=jnp.float32)
    target2 = jnp.sign(jax.random.normal(k4, (B2,), dtype=jnp.float32))
    loss2 = hinge_loss(output2, target2, min_pallas_elems=0)
    jax.block_until_ready(loss2)
    ref2 = _reference(output2, target2)
    assert loss2.shape == ref2.shape
    assert jnp.allclose(loss2, ref2, atol=1e-6), "mismatch (multi-block case)"

    # Ragged batch (not a multiple of 128) -> routed to the fused XLA path.
    B3 = 200
    output3 = jax.random.normal(k5, (B3, 1), dtype=jnp.float32)
    target3 = jnp.sign(jax.random.normal(k6, (B3,), dtype=jnp.float32))
    loss3 = hinge_loss(output3, target3)
    jax.block_until_ready(loss3)
    ref3 = _reference(output3, target3)
    assert loss3.shape == ref3.shape
    assert jnp.allclose(loss3, ref3, atol=1e-6), "mismatch (ragged case)"

    print("KERNEL_OK")
</pallas_src>

<mosaic_0001>
module attributes {stable_mosaic.version = 11 : i64} {
  func.func @_hinge_kernel(%arg0: i32, %arg1: memref<1x256xf32, #tpu.memory_space<vmem>>, %arg2: memref<1x256xf32, #tpu.memory_space<vmem>>, %arg3: memref<1x256xf32, #tpu.memory_space<vmem>>) attributes {dimension_semantics = [#tpu.dimension_semantics<parallel>], iteration_bounds = array<i64: 1>, scalar_prefetch = 0 : i64, scratch_operands = 0 : i64, tpu.core_type = #tpu.core_type<tc>, window_params = [{transform_indices = @transform_0, window_bounds = array<i64: 1, 256>}, {transform_indices = @transform_1, window_bounds = array<i64: 1, 256>}, {transform_indices = @transform_2, window_bounds = array<i64: 1, 256>}]} {
    %c0 = arith.constant 0 : index
    %c0_0 = arith.constant 0 : index
    %0 = vector.load %arg1[%c0, %c0_0] : memref<1x256xf32, #tpu.memory_space<vmem>>, vector<1x256xf32>
    %c0_1 = arith.constant 0 : index
    %c0_2 = arith.constant 0 : index
    %1 = vector.load %arg2[%c0_1, %c0_2] : memref<1x256xf32, #tpu.memory_space<vmem>>, vector<1x256xf32>
    %2 = arith.mulf %0, %1 : vector<1x256xf32>
    %cst = arith.constant 1.000000e+00 : f32
    %3 = vector.broadcast %cst : f32 to vector<1x256xf32>
    %4 = arith.subf %3, %2 : vector<1x256xf32>
    %cst_3 = arith.constant 0.000000e+00 : f32
    %5 = vector.broadcast %cst_3 : f32 to vector<1x256xf32>
    %6 = arith.maximumf %4, %5 : vector<1x256xf32>
    %c0_4 = arith.constant 0 : index
    %c0_5 = arith.constant 0 : index
    %7 = vector.load %arg3[%c0_4, %c0_5] : memref<1x256xf32, #tpu.memory_space<vmem>>, vector<1x256xf32>
    tpu.vector_store %arg3[%c0_4, %c0_5], %6 {strides = array<i32>} : memref<1x256xf32, #tpu.memory_space<vmem>>, vector<1x256xf32>,
    return
  }
  func.func @transform_0(%arg0: i32) -> (i32, i32) {
    %c0_i32 = arith.constant 0 : i32
    %c0_i32_0 = arith.constant 0 : i32
    return %arg0, %c0_i32 : i32, i32
  }
  func.func @transform_1(%arg0: i32) -> (i32, i32) {
    %c0_i32 = arith.constant 0 : i32
    %c0_i32_0 = arith.constant 0 : i32
    return %arg0, %c0_i32 : i32, i32
  }
  func.func @transform_2(%arg0: i32) -> (i32, i32) {
    %c0_i32 = arith.constant 0 : i32
    %c0_i32_0 = arith.constant 0 : i32
    return %arg0, %c0_i32 : i32, i32
  }
}

</mosaic_0001>

<llo_original>
// kernel: tpu_custom_call.1
$region0: #{tpu_custom_call.1}
  #allocation0 [shape = 'u32[]', space=smem, size = 0x4, offset = 0x4, fixed_abs, tag = 'smem constant byte address 0x4 - core index']
  #allocation1 [shape = 'u32[72,128]{1,0:T(1,128)}', space=vmem, size = 0x9000, scoped, tag = 'internal scratch']
  %s0 = inlined_call_operand.hbm [shape: f32[1,256], index: 0, kind: input, shape index: {}]
  %s1 = inlined_call_operand.hbm [shape: f32[1,256], index: 1, kind: input, shape index: {}]
  %s2 = inlined_call_operand.hbm [shape: f32[1,256], index: 2, kind: output, shape index: {}]
  %s3 = sld [smem:[#allocation0]]
  $region26: #{tpu_custom_call.1} parent=0
    _
  %s5 = ssub.s32 1, %s3
  %s6 = scalar_select 0, %s5, %s3
  $region1: #{tpu_custom_call.1} parent=0
    #allocation2 [shape = 'u8[1024]{0}', space=vmem, size = 0x400, scoped, tag = 'input window, operand 0, single buffered']
    #allocation3 [shape = 's32[1]{0}', space=sflag, size = 0x4, scoped, tag = 'scoped memory for tpu_custom_call.1']
    #allocation4 [shape = 's32[1]{0}', space=sflag, size = 0x4, scoped, tag = 'scoped memory for tpu_custom_call.1']
    #allocation5 [shape = 'u8[1024]{0}', space=vmem, size = 0x400, scoped, tag = 'input window, operand 1, single buffered']
    #allocation6 [shape = 's32[1]{0}', space=sflag, size = 0x4, scoped, tag = 'scoped memory for tpu_custom_call.1']
    #allocation7 [shape = 'u8[1024]{0}', space=vmem, size = 0x400, scoped, tag = 'output window, operand 0, single buffered']
    %7 = vsyncpa [#allocation3], 0
    %8 = vsyncpa [#allocation6], 0
    %9 = vsyncpa [#allocation4], 0
    // Predicated region
    $region2: #{tpu_custom_call.1} parent=1 // pred_check
      _
    $region3: #{tpu_custom_call.1} parent=1 // pred_check_branch
      %11 = sbr.rel (0) target = $region5
    $region4: #{tpu_custom_call.1} parent=1 // pred_region
      %13 = vsyncadd [#allocation3], 0
      %s15 = sshll.u32 %s0, 4
      %s16 = int_to_ptr.hbm [resolvable:$true] %s15
      %s17 = sshll.u32 [#allocation2], 4
      %s18 = int_to_ptr.vmem [resolvable:$true] %s17
      %20 = dma.hbm_to_vmem [thread:$0]  %s16, 32, %s18, [#allocation3]
    $region5: #{tpu_custom_call.1} parent=1 // pred_fallthru
      _
    // Predicated region
    $region6: #{tpu_custom_call.1} parent=1 // pred_check
      _
    $region7: #{tpu_custom_call.1} parent=1 // pred_check_branch
      %22 = sbr.rel (0) target = $region9
    $region8: #{tpu_custom_call.1} parent=1 // pred_region
      %24 = vsyncadd [#allocation6], 0
      %s26 = sshll.u32 %s1, 4
      %s27 = int_to_ptr.hbm [resolvable:$true] %s26
      %s28 = sshll.u32 [#allocation5], 4
      %s29 = int_to_ptr.vmem [resolvable:$true] %s28
      %31 = dma.hbm_to_vmem [thread:$0]  %s27, 32, %s29, [#allocation6]
    $region9: #{tpu_custom_call.1} parent=1 // pred_fallthru
      _
    // Predicated region
    $region10: #{tpu_custom_call.1} parent=1 // pred_check
      _
    $region11: #{tpu_custom_call.1} parent=1 // pred_check_branch
      %33 = sbr.rel (0) target = $region13
    $region12: #{tpu_custom_call.1} parent=1 // pred_region
      %35 = dma.done [#allocation3], 32
    $region13: #{tpu_custom_call.1} parent=1 // pred_fallthru
      _
    // Predicated region
    $region14: #{tpu_custom_call.1} parent=1 // pred_check
      _
    $region15: #{tpu_custom_call.1} parent=1 // pred_check_branch
      %37 = sbr.rel (0) target = $region17
    $region16: #{tpu_custom_call.1} parent=1 // pred_region
      %39 = dma.done [#allocation6], 32
    $region17: #{tpu_custom_call.1} parent=1 // pred_fallthru
      _
    %v40 = vld [vmem:[#allocation2] sm:$0x3]
    %v41 = vld [vmem:[#allocation5] sm:$0x3]
    %v42 = vmul.f32 %v40, %v41
    %v43 = vsub.f32 1.0, %v42
    %v44 = vmax.f32 %v43, 0.0
    %v45 = vlaneseq
    %vm46 = vcmp.ge.s32.totalorder %v45, 0
    %vm47 = vcmp.lt.s32.totalorder %v45, 256
    %vm48 = vmand %vm46, %vm47
    %49 = vst.msk [vmem:[#allocation7] sm:$0x3] %vm48, %v44
    // Predicated region
    $region18: #{tpu_custom_call.1} parent=1 // pred_check
      _
    $region19: #{tpu_custom_call.1} parent=1 // pred_check_branch
      %51 = sbr.rel (0) target = $region21
    $region20: #{tpu_custom_call.1} parent=1 // pred_region
      %53 = vsyncadd [#allocation4], 0
      %s55 = sshll.u32 [#allocation7], 4
      %s56 = int_to_ptr.vmem [resolvable:$true] %s55
      %s57 = sshll.u32 %s2, 4
      %s58 = int_to_ptr.hbm [resolvable:$true] %s57
      %60 = dma.vmem_to_hbm [thread:$0]  %s56, 32, %s58, [#allocation4]
    $region21: #{tpu_custom_call.1} parent=1 // pred_fallthru
      _
    // Predicated region
    $region22: #{tpu_custom_call.1} parent=1 // pred_check
      _
    $region23: #{tpu_custom_call.1} parent=1 // pred_check_branch
      %62 = sbr.rel (0) target = $region25
    $region24: #{tpu_custom_call.1} parent=1 // pred_region
      %64 = dma.done [#allocation4], 32
    $region25: #{tpu_custom_call.1} parent=1 // pred_fallthru
      _
    %65 = vsyncpa [#allocation3], 1
    %66 = vsyncpa [#allocation6], 1
    %67 = vsyncpa [#allocation4], 1

</llo_original>
